<compile_context>
chip_gen: v5e
topology: v5e:2x2
jax: 0.10.0
libtpu: 0.0.40
codegen_flags: <defaults>
</compile_context>

<pallas_src>
import functools

import jax
import jax.numpy as jnp
from jax.experimental import pallas as pl
from jax.experimental.pallas import tpu as pltpu

# Model hyperparameters (from BigModel.__init__ defaults)
IN_DIM = 5
HIDDEN = [20, 20, 20, 20, 20, 10, 10, 10, 10, 10]
OUT_DIM = 1
N_LAYERS = 11  # 10 hidden + output

FP = 32      # padded feature width for hidden activations / weights (max true dim is 20)
IN_PAD = 8   # input feature dim padded to one sublane tile (5 -> 8)


def mlp_kernel(x_ref, w0_ref, w_ref, b_ref, o_ref):
    """All 11 matmuls + ReLUs fused; activations are (features, batch_tile)."""
    # Layer 0: (32, 8) @ (8, tb) -> (32, tb), f32 accumulation on the MXU.
    h = jnp.dot(w0_ref[...], x_ref[...], preferred_element_type=jnp.float32)
    h = jnp.maximum(h + b_ref[0], 0.0)
    # Layers 1..10: (32, 32) @ (32, tb); static indexing into the stacked params.
    for i in range(1, N_LAYERS):
        h = jnp.dot(w_ref[i - 1], h, preferred_element_type=jnp.float32)
        h = h + b_ref[i]                 # (32, 1) broadcasts across batch lanes
        if i < N_LAYERS - 1:
            h = jnp.maximum(h, 0.0)      # ReLU on all but the final layer
    # Only row 0 is the real output; write a single lane-dense row.
    o_ref[...] = h[:OUT_DIM, :].astype(o_ref.dtype)


def init_params(key):
    """PyTorch nn.Linear default init: U(-1/sqrt(fan_in), 1/sqrt(fan_in)).

    Weights are stored in PyTorch orientation: (out_features, in_features).
    """
    dims = [IN_DIM] + HIDDEN + [OUT_DIM]
    weights, biases = [], []
    for i in range(N_LAYERS):
        fan_in, fan_out = dims[i], dims[i + 1]
        key, kw, kb = jax.random.split(key, 3)
        bound = 1.0 / jnp.sqrt(fan_in)
        weights.append(jax.random.uniform(kw, (fan_out, fan_in), jnp.float32, -bound, bound))
        biases.append(jax.random.uniform(kb, (fan_out,), jnp.float32, -bound, bound))
    return weights, biases


def pack_params(weights, biases):
    """Zero-pad and consolidate the 22 parameter arrays into 3 kernel inputs."""
    w0p = jnp.zeros((FP, IN_PAD), jnp.float32).at[: weights[0].shape[0], :IN_DIM].set(weights[0])
    w_stack = jnp.zeros((N_LAYERS - 1, FP, FP), jnp.float32)
    for i in range(1, N_LAYERS):
        w = weights[i]
        w_stack = w_stack.at[i - 1, : w.shape[0], : w.shape[1]].set(w)
    b_stack = jnp.zeros((N_LAYERS, FP, 1), jnp.float32)
    for i in range(N_LAYERS):
        b = biases[i]
        b_stack = b_stack.at[i, : b.shape[0], 0].set(b)
    return w0p, w_stack, b_stack


def big_model_forward_fm(xT, w0p, w_stack, b_stack, *, block_batch=8192):
    """Feature-major forward: xT (IN_PAD, B) f32 -> (1, B) f32.

    xT rows >= IN_DIM must be zero (exact feature padding). This feature-major,
    8-sublane-padded layout is the op's external contract, so no transpose/pad
    HBM round trip happens here.
    """
    in_pad, B = xT.shape
    assert in_pad == IN_PAD, f"expected {IN_PAD} feature rows, got {in_pad}"

    # Batch tile: multiple of 128, no bigger than the (128-rounded) batch.
    bb = max(128, pl.cdiv(block_batch, 128) * 128)
    b128 = pl.cdiv(B, 128) * 128
    tb = min(bb, b128)
    # Keep >=2 grid blocks when the batch allows so v7x shards across both TCs
    # (neutral on single-TC v5e/v6e).
    if pl.cdiv(b128, tb) < 2 and b128 >= 256:
        tb = pl.cdiv(pl.cdiv(b128, 2), 128) * 128
    num_blocks = pl.cdiv(b128, tb)
    Bp = num_blocks * tb

    if Bp != B:
        # Ragged batch: zero-pad columns (padded columns are sliced off below).
        xT = jnp.pad(xT, ((0, 0), (0, Bp - B)))

    in_specs = [
        pl.BlockSpec((IN_PAD, tb), lambda i: (0, i)),
        # Constant index_maps: parameters stay VMEM-resident across batch tiles.
        pl.BlockSpec((FP, IN_PAD), lambda i: (0, 0)),
        pl.BlockSpec((N_LAYERS - 1, FP, FP), lambda i: (0, 0, 0)),
        pl.BlockSpec((N_LAYERS, FP, 1), lambda i: (0, 0, 0)),
    ]
    out_specs = pl.BlockSpec((OUT_DIM, tb), lambda i: (0, i))

    out = pl.pallas_call(
        mlp_kernel,
        out_shape=jax.ShapeDtypeStruct((OUT_DIM, Bp), jnp.float32),
        grid=(num_blocks,),
        in_specs=in_specs,
        out_specs=out_specs,
        compiler_params=pltpu.CompilerParams(dimension_semantics=("parallel",)),
    )(xT, w0p, w_stack, b_stack)

    return out[:, :B]


def big_model_forward(x, weights, biases, *, block_batch=8192):
    """Convenience wrapper from the PyTorch layout: x (B, IN_DIM) -> (B, 1).

    # TODO(synk): in a real pipeline, fuse this pad/transpose into the upstream
    # producer (or keep data feature-major end to end) to avoid the extra HBM pass.
    """
    B = x.shape[0]
    xT = jnp.zeros((IN_PAD, B), jnp.float32).at[:IN_DIM, :].set(x.T)
    w0p, w_stack, b_stack = pack_params(weights, biases)
    yT = big_model_forward_fm(xT, w0p, w_stack, b_stack, block_batch=block_batch)
    return yT.T


def reference_forward(x, weights, biases):
    h = x
    for i in range(N_LAYERS):
        h = h @ weights[i].T + biases[i]
        if i < N_LAYERS - 1:
            h = jnp.maximum(h, 0.0)
    return h


if __name__ == "__main__":
    key = jax.random.PRNGKey(0)
    key, kx = jax.random.split(key)

    batch = 384  # small, 3 x 128; block_batch=256 below exercises a 2-step grid + ragged pad

    # Example input generated directly in the kernel's external (feature-major,
    # 8-row padded) contract — rows >= IN_DIM stay exactly zero.
    xT = jnp.zeros((IN_PAD, batch), jnp.float32).at[:IN_DIM, :].set(
        jax.random.normal(kx, (IN_DIM, batch), jnp.float32)
    )

    weights, biases = init_params(key)
    w0p, w_stack, b_stack = pack_params(weights, biases)

    fwd = jax.jit(functools.partial(big_model_forward_fm, block_batch=256))
    yT = jax.block_until_ready(fwd(xT, w0p, w_stack, b_stack))

    # Validate against the row-major PyTorch-style reference.
    x = xT[:IN_DIM, :].T
    y_ref = reference_forward(x, weights, biases)

    assert yT.shape == (OUT_DIM, batch)
    assert jnp.allclose(yT.T, y_ref, atol=1e-5, rtol=1e-5), "mismatch vs reference"

    print("KERNEL_OK")
</pallas_src>

<mosaic_0001>
module attributes {stable_mosaic.version = 11 : i64} {
  func.func @mlp_kernel(%arg0: i32, %arg1: memref<8x256xf32, #tpu.memory_space<vmem>>, %arg2: memref<32x8xf32, #tpu.memory_space<vmem>>, %arg3: memref<10x32x32xf32, #tpu.memory_space<vmem>>, %arg4: memref<11x32x1xf32, #tpu.memory_space<vmem>>, %arg5: memref<1x256xf32, #tpu.memory_space<vmem>>) attributes {dimension_semantics = [#tpu.dimension_semantics<parallel>], iteration_bounds = array<i64: 2>, scalar_prefetch = 0 : i64, scratch_operands = 0 : i64, tpu.core_type = #tpu.core_type<tc>, window_params = [{transform_indices = @transform_0, window_bounds = array<i64: 8, 256>}, {pipeline_mode = #tpu.pipeline_mode<synchronous>, transform_indices = @transform_1, window_bounds = array<i64: 32, 8>}, {pipeline_mode = #tpu.pipeline_mode<synchronous>, transform_indices = @transform_2, window_bounds = array<i64: 10, 32, 32>}, {pipeline_mode = #tpu.pipeline_mode<synchronous>, transform_indices = @transform_3, window_bounds = array<i64: 11, 32, 1>}, {transform_indices = @transform_4, window_bounds = array<i64: 1, 256>}]} {
    %c0 = arith.constant 0 : index
    %c0_0 = arith.constant 0 : index
    %0 = vector.load %arg2[%c0, %c0_0] : memref<32x8xf32, #tpu.memory_space<vmem>>, vector<32x8xf32>
    %c0_1 = arith.constant 0 : index
    %c0_2 = arith.constant 0 : index
    %1 = vector.load %arg1[%c0_1, %c0_2] : memref<8x256xf32, #tpu.memory_space<vmem>>, vector<8x256xf32>
    %cst = arith.constant dense<0.000000e+00> : vector<32x256xf32>
    %2 = tpu.matmul %0, %1, %cst {dimension_numbers = #tpu.dot_dimension_numbers<[1], [0], [0], [1], [0, 0, 1, 1], [], []>} : vector<32x8xf32>, vector<8x256xf32>, vector<32x256xf32> -> vector<32x256xf32>
    %c0_3 = arith.constant 0 : index
    %c0_4 = arith.constant 0 : index
    %c0_5 = arith.constant 0 : index
    %3 = vector.load %arg4[%c0_3, %c0_4, %c0_5] : memref<11x32x1xf32, #tpu.memory_space<vmem>>, vector<1x32x1xf32>
    %4 = vector.shape_cast %3 : vector<1x32x1xf32> to vector<32x1xf32>
    %5 = vector.broadcast %4 : vector<32x1xf32> to vector<32x256xf32>
    %6 = arith.addf %2, %5 : vector<32x256xf32>
    %cst_6 = arith.constant 0.000000e+00 : f32
    %7 = vector.broadcast %cst_6 : f32 to vector<32x256xf32>
    %8 = arith.maximumf %6, %7 : vector<32x256xf32>
    %c0_7 = arith.constant 0 : index
    %c0_8 = arith.constant 0 : index
    %c0_9 = arith.constant 0 : index
    %9 = vector.load %arg3[%c0_7, %c0_8, %c0_9] : memref<10x32x32xf32, #tpu.memory_space<vmem>>, vector<1x32x32xf32>
    %10 = vector.shape_cast %9 : vector<1x32x32xf32> to vector<32x32xf32>
    %cst_10 = arith.constant dense<0.000000e+00> : vector<32x256xf32>
    %11 = tpu.matmul %10, %8, %cst_10 {dimension_numbers = #tpu.dot_dimension_numbers<[1], [0], [0], [1], [0, 0, 1, 1], [], []>} : vector<32x32xf32>, vector<32x256xf32>, vector<32x256xf32> -> vector<32x256xf32>
    %c1 = arith.constant 1 : index
    %c0_11 = arith.constant 0 : index
    %c0_12 = arith.constant 0 : index
    %12 = vector.load %arg4[%c1, %c0_11, %c0_12] : memref<11x32x1xf32, #tpu.memory_space<vmem>>, vector<1x32x1xf32>
    %13 = vector.shape_cast %12 : vector<1x32x1xf32> to vector<32x1xf32>
    %14 = vector.broadcast %13 : vector<32x1xf32> to vector<32x256xf32>
    %15 = arith.addf %11, %14 : vector<32x256xf32>
    %cst_13 = arith.constant 0.000000e+00 : f32
    %16 = vector.broadcast %cst_13 : f32 to vector<32x256xf32>
    %17 = arith.maximumf %15, %16 : vector<32x256xf32>
    %c1_14 = arith.constant 1 : index
    %c0_15 = arith.constant 0 : index
    %c0_16 = arith.constant 0 : index
    %18 = vector.load %arg3[%c1_14, %c0_15, %c0_16] : memref<10x32x32xf32, #tpu.memory_space<vmem>>, vector<1x32x32xf32>
    %19 = vector.shape_cast %18 : vector<1x32x32xf32> to vector<32x32xf32>
    %cst_17 = arith.constant dense<0.000000e+00> : vector<32x256xf32>
    %20 = tpu.matmul %19, %17, %cst_17 {dimension_numbers = #tpu.dot_dimension_numbers<[1], [0], [0], [1], [0, 0, 1, 1], [], []>} : vector<32x32xf32>, vector<32x256xf32>, vector<32x256xf32> -> vector<32x256xf32>
    %c2 = arith.constant 2 : index
    %c0_18 = arith.constant 0 : index
    %c0_19 = arith.constant 0 : index
    %21 = vector.load %arg4[%c2, %c0_18, %c0_19] : memref<11x32x1xf32, #tpu.memory_space<vmem>>, vector<1x32x1xf32>
    %22 = vector.shape_cast %21 : vector<1x32x1xf32> to vector<32x1xf32>
    %23 = vector.broadcast %22 : vector<32x1xf32> to vector<32x256xf32>
    %24 = arith.addf %20, %23 : vector<32x256xf32>
    %cst_20 = arith.constant 0.000000e+00 : f32
    %25 = vector.broadcast %cst_20 : f32 to vector<32x256xf32>
    %26 = arith.maximumf %24, %25 : vector<32x256xf32>
    %c2_21 = arith.constant 2 : index
    %c0_22 = arith.constant 0 : index
    %c0_23 = arith.constant 0 : index
    %27 = vector.load %arg3[%c2_21, %c0_22, %c0_23] : memref<10x32x32xf32, #tpu.memory_space<vmem>>, vector<1x32x32xf32>
    %28 = vector.shape_cast %27 : vector<1x32x32xf32> to vector<32x32xf32>
    %cst_24 = arith.constant dense<0.000000e+00> : vector<32x256xf32>
    %29 = tpu.matmul %28, %26, %cst_24 {dimension_numbers = #tpu.dot_dimension_numbers<[1], [0], [0], [1], [0, 0, 1, 1], [], []>} : vector<32x32xf32>, vector<32x256xf32>, vector<32x256xf32> -> vector<32x256xf32>
    %c3 = arith.constant 3 : index
    %c0_25 = arith.constant 0 : index
    %c0_26 = arith.constant 0 : index
    %30 = vector.load %arg4[%c3, %c0_25, %c0_26] : memref<11x32x1xf32, #tpu.memory_space<vmem>>, vector<1x32x1xf32>
    %31 = vector.shape_cast %30 : vector<1x32x1xf32> to vector<32x1xf32>
    %32 = vector.broadcast %31 : vector<32x1xf32> to vector<32x256xf32>
    %33 = arith.addf %29, %32 : vector<32x256xf32>
    %cst_27 = arith.constant 0.000000e+00 : f32
    %34 = vector.broadcast %cst_27 : f32 to vector<32x256xf32>
    %35 = arith.maximumf %33, %34 : vector<32x256xf32>
    %c3_28 = arith.constant 3 : index
    %c0_29 = arith.constant 0 : index
    %c0_30 = arith.constant 0 : index
    %36 = vector.load %arg3[%c3_28, %c0_29, %c0_30] : memref<10x32x32xf32, #tpu.memory_space<vmem>>, vector<1x32x32xf32>
    %37 = vector.shape_cast %36 : vector<1x32x32xf32> to vector<32x32xf32>
    %cst_31 = arith.constant dense<0.000000e+00> : vector<32x256xf32>
    %38 = tpu.matmul %37, %35, %cst_31 {dimension_numbers = #tpu.dot_dimension_numbers<[1], [0], [0], [1], [0, 0, 1, 1], [], []>} : vector<32x32xf32>, vector<32x256xf32>, vector<32x256xf32> -> vector<32x256xf32>
    %c4 = arith.constant 4 : index
    %c0_32 = arith.constant 0 : index
    %c0_33 = arith.constant 0 : index
    %39 = vector.load %arg4[%c4, %c0_32, %c0_33] : memref<11x32x1xf32, #tpu.memory_space<vmem>>, vector<1x32x1xf32>
    %40 = vector.shape_cast %39 : vector<1x32x1xf32> to vector<32x1xf32>
    %41 = vector.broadcast %40 : vector<32x1xf32> to vector<32x256xf32>
    %42 = arith.addf %38, %41 : vector<32x256xf32>
    %cst_34 = arith.constant 0.000000e+00 : f32
    %43 = vector.broadcast %cst_34 : f32 to vector<32x256xf32>
    %44 = arith.maximumf %42, %43 : vector<32x256xf32>
    %c4_35 = arith.constant 4 : index
    %c0_36 = arith.constant 0 : index
    %c0_37 = arith.constant 0 : index
    %45 = vector.load %arg3[%c4_35, %c0_36, %c0_37] : memref<10x32x32xf32, #tpu.memory_space<vmem>>, vector<1x32x32xf32>
    %46 = vector.shape_cast %45 : vector<1x32x32xf32> to vector<32x32xf32>
    %cst_38 = arith.constant dense<0.000000e+00> : vector<32x256xf32>
    %47 = tpu.matmul %46, %44, %cst_38 {dimension_numbers = #tpu.dot_dimension_numbers<[1], [0], [0], [1], [0, 0, 1, 1], [], []>} : vector<32x32xf32>, vector<32x256xf32>, vector<32x256xf32> -> vector<32x256xf32>
    %c5 = arith.constant 5 : index
    %c0_39 = arith.constant 0 : index
    %c0_40 = arith.constant 0 : index
    %48 = vector.load %arg4[%c5, %c0_39, %c0_40] : memref<11x32x1xf32, #tpu.memory_space<vmem>>, vector<1x32x1xf32>
    %49 = vector.shape_cast %48 : vector<1x32x1xf32> to vector<32x1xf32>
    %50 = vector.broadcast %49 : vector<32x1xf32> to vector<32x256xf32>
    %51 = arith.addf %47, %50 : vector<32x256xf32>
    %cst_41 = arith.constant 0.000000e+00 : f32
    %52 = vector.broadcast %cst_41 : f32 to vector<32x256xf32>
    %53 = arith.maximumf %51, %52 : vector<32x256xf32>
    %c5_42 = arith.constant 5 : index
    %c0_43 = arith.constant 0 : index
    %c0_44 = arith.constant 0 : index
    %54 = vector.load %arg3[%c5_42, %c0_43, %c0_44] : memref<10x32x32xf32, #tpu.memory_space<vmem>>, vector<1x32x32xf32>
    %55 = vector.shape_cast %54 : vector<1x32x32xf32> to vector<32x32xf32>
    %cst_45 = arith.constant dense<0.000000e+00> : vector<32x256xf32>
    %56 = tpu.matmul %55, %53, %cst_45 {dimension_numbers = #tpu.dot_dimension_numbers<[1], [0], [0], [1], [0, 0, 1, 1], [], []>} : vector<32x32xf32>, vector<32x256xf32>, vector<32x256xf32> -> vector<32x256xf32>
    %c6 = arith.constant 6 : index
    %c0_46 = arith.constant 0 : index
    %c0_47 = arith.constant 0 : index
    %57 = vector.load %arg4[%c6, %c0_46, %c0_47] : memref<11x32x1xf32, #tpu.memory_space<vmem>>, vector<1x32x1xf32>
    %58 = vector.shape_cast %57 : vector<1x32x1xf32> to vector<32x1xf32>
    %59 = vector.broadcast %58 : vector<32x1xf32> to vector<32x256xf32>
    %60 = arith.addf %56, %59 : vector<32x256xf32>
    %cst_48 = arith.constant 0.000000e+00 : f32
    %61 = vector.broadcast %cst_48 : f32 to vector<32x256xf32>
    %62 = arith.maximumf %60, %61 : vector<32x256xf32>
    %c6_49 = arith.constant 6 : index
    %c0_50 = arith.constant 0 : index
    %c0_51 = arith.constant 0 : index
    %63 = vector.load %arg3[%c6_49, %c0_50, %c0_51] : memref<10x32x32xf32, #tpu.memory_space<vmem>>, vector<1x32x32xf32>
    %64 = vector.shape_cast %63 : vector<1x32x32xf32> to vector<32x32xf32>
    %cst_52 = arith.constant dense<0.000000e+00> : vector<32x256xf32>
    %65 = tpu.matmul %64, %62, %cst_52 {dimension_numbers = #tpu.dot_dimension_numbers<[1], [0], [0], [1], [0, 0, 1, 1], [], []>} : vector<32x32xf32>, vector<32x256xf32>, vector<32x256xf32> -> vector<32x256xf32>
    %c7 = arith.constant 7 : index
    %c0_53 = arith.constant 0 : index
    %c0_54 = arith.constant 0 : index
    %66 = vector.load %arg4[%c7, %c0_53, %c0_54] : memref<11x32x1xf32, #tpu.memory_space<vmem>>, vector<1x32x1xf32>
    %67 = vector.shape_cast %66 : vector<1x32x1xf32> to vector<32x1xf32>
    %68 = vector.broadcast %67 : vector<32x1xf32> to vector<32x256xf32>
    %69 = arith.addf %65, %68 : vector<32x256xf32>
    %cst_55 = arith.constant 0.000000e+00 : f32
    %70 = vector.broadcast %cst_55 : f32 to vector<32x256xf32>
    %71 = arith.maximumf %69, %70 : vector<32x256xf32>
    %c7_56 = arith.constant 7 : index
    %c0_57 = arith.constant 0 : index
    %c0_58 = arith.constant 0 : index
    %72 = vector.load %arg3[%c7_56, %c0_57, %c0_58] : memref<10x32x32xf32, #tpu.memory_space<vmem>>, vector<1x32x32xf32>
    %73 = vector.shape_cast %72 : vector<1x32x32xf32> to vector<32x32xf32>
    %cst_59 = arith.constant dense<0.000000e+00> : vector<32x256xf32>
    %74 = tpu.matmul %73, %71, %cst_59 {dimension_numbers = #tpu.dot_dimension_numbers<[1], [0], [0], [1], [0, 0, 1, 1], [], []>} : vector<32x32xf32>, vector<32x256xf32>, vector<32x256xf32> -> vector<32x256xf32>
    %c8 = arith.constant 8 : index
    %c0_60 = arith.constant 0 : index
    %c0_61 = arith.constant 0 : index
    %75 = vector.load %arg4[%c8, %c0_60, %c0_61] : memref<11x32x1xf32, #tpu.memory_space<vmem>>, vector<1x32x1xf32>
    %76 = vector.shape_cast %75 : vector<1x32x1xf32> to vector<32x1xf32>
    %77 = vector.broadcast %76 : vector<32x1xf32> to vector<32x256xf32>
    %78 = arith.addf %74, %77 : vector<32x256xf32>
    %cst_62 = arith.constant 0.000000e+00 : f32
    %79 = vector.broadcast %cst_62 : f32 to vector<32x256xf32>
    %80 = arith.maximumf %78, %79 : vector<32x256xf32>
    %c8_63 = arith.constant 8 : index
    %c0_64 = arith.constant 0 : index
    %c0_65 = arith.constant 0 : index
    %81 = vector.load %arg3[%c8_63, %c0_64, %c0_65] : memref<10x32x32xf32, #tpu.memory_space<vmem>>, vector<1x32x32xf32>
    %82 = vector.shape_cast %81 : vector<1x32x32xf32> to vector<32x32xf32>
    %cst_66 = arith.constant dense<0.000000e+00> : vector<32x256xf32>
    %83 = tpu.matmul %82, %80, %cst_66 {dimension_numbers = #tpu.dot_dimension_numbers<[1], [0], [0], [1], [0, 0, 1, 1], [], []>} : vector<32x32xf32>, vector<32x256xf32>, vector<32x256xf32> -> vector<32x256xf32>
    %c9 = arith.constant 9 : index
    %c0_67 = arith.constant 0 : index
    %c0_68 = arith.constant 0 : index
    %84 = vector.load %arg4[%c9, %c0_67, %c0_68] : memref<11x32x1xf32, #tpu.memory_space<vmem>>, vector<1x32x1xf32>
    %85 = vector.shape_cast %84 : vector<1x32x1xf32> to vector<32x1xf32>
    %86 = vector.broadcast %85 : vector<32x1xf32> to vector<32x256xf32>
    %87 = arith.addf %83, %86 : vector<32x256xf32>
    %cst_69 = arith.constant 0.000000e+00 : f32
    %88 = vector.broadcast %cst_69 : f32 to vector<32x256xf32>
    %89 = arith.maximumf %87, %88 : vector<32x256xf32>
    %c9_70 = arith.constant 9 : index
    %c0_71 = arith.constant 0 : index
    %c0_72 = arith.constant 0 : index
    %90 = vector.load %arg3[%c9_70, %c0_71, %c0_72] : memref<10x32x32xf32, #tpu.memory_space<vmem>>, vector<1x32x32xf32>
    %91 = vector.shape_cast %90 : vector<1x32x32xf32> to vector<32x32xf32>
    %cst_73 = arith.constant dense<0.000000e+00> : vector<32x256xf32>
    %92 = tpu.matmul %91, %89, %cst_73 {dimension_numbers = #tpu.dot_dimension_numbers<[1], [0], [0], [1], [0, 0, 1, 1], [], []>} : vector<32x32xf32>, vector<32x256xf32>, vector<32x256xf32> -> vector<32x256xf32>
    %c10 = arith.constant 10 : index
    %c0_74 = arith.constant 0 : index
    %c0_75 = arith.constant 0 : index
    %93 = vector.load %arg4[%c10, %c0_74, %c0_75] : memref<11x32x1xf32, #tpu.memory_space<vmem>>, vector<1x32x1xf32>
    %94 = vector.shape_cast %93 : vector<1x32x1xf32> to vector<32x1xf32>
    %95 = vector.broadcast %94 : vector<32x1xf32> to vector<32x256xf32>
    %96 = arith.addf %92, %95 : vector<32x256xf32>
    %97 = vector.extract_strided_slice %96 {offsets = [0, 0], sizes = [1, 256], strides = [1, 1]} : vector<32x256xf32> to vector<1x256xf32>
    %c0_76 = arith.constant 0 : index
    %c0_77 = arith.constant 0 : index
    %98 = vector.load %arg5[%c0_76, %c0_77] : memref<1x256xf32, #tpu.memory_space<vmem>>, vector<1x256xf32>
    tpu.vector_store %arg5[%c0_76, %c0_77], %97 {strides = array<i32>} : memref<1x256xf32, #tpu.memory_space<vmem>>, vector<1x256xf32>,
    return
  }
  func.func @transform_0(%arg0: i32) -> (i32, i32) {
    %c0_i32 = arith.constant 0 : i32
    %c0_i32_0 = arith.constant 0 : i32
    return %c0_i32, %arg0 : i32, i32
  }
  func.func @transform_1(%arg0: i32) -> (i32, i32) {
    %c0_i32 = arith.constant 0 : i32
    %c0_i32_0 = arith.constant 0 : i32
    %c0_i32_1 = arith.constant 0 : i32
    return %c0_i32, %c0_i32_0 : i32, i32
  }
  func.func @transform_2(%arg0: i32) -> (i32, i32, i32) {
    %c0_i32 = arith.constant 0 : i32
    %c0_i32_0 = arith.constant 0 : i32
    %c0_i32_1 = arith.constant 0 : i32
    %c0_i32_2 = arith.constant 0 : i32
    return %c0_i32, %c0_i32_0, %c0_i32_1 : i32, i32, i32
  }
  func.func @transform_3(%arg0: i32) -> (i32, i32, i32) {
    %c0_i32 = arith.constant 0 : i32
    %c0_i32_0 = arith.constant 0 : i32
    %c0_i32_1 = arith.constant 0 : i32
    %c0_i32_2 = arith.constant 0 : i32
    return %c0_i32, %c0_i32_0, %c0_i32_1 : i32, i32, i32
  }
  func.func @transform_4(%arg0: i32) -> (i32, i32) {
    %c0_i32 = arith.constant 0 : i32
    %c0_i32_0 = arith.constant 0 : i32
    return %c0_i32, %arg0 : i32, i32
  }
}

</mosaic_0001>

<llo_original>
// kernel: big_model_forward_fm.1
$region0: #{big_model_forward_fm.1}
  #allocation0 [shape = 'u32[]', space=smem, size = 0x4, offset = 0x4, fixed_abs, tag = 'smem constant byte address 0x4 - core index']
  #allocation1 [shape = 'u32[72,128]{1,0:T(1,128)}', space=vmem, size = 0x9000, scoped, tag = 'internal scratch']
  %s0 = inlined_call_operand.vmem [shape: f32[8,512], index: 0, kind: input, shape index: {}]
  %s1 = inlined_call_operand.vmem [shape: f32[32,8], index: 1, kind: input, shape index: {}]
  %s2 = inlined_call_operand.vmem [shape: f32[10,32,32], index: 2, kind: input, shape index: {}]
  %s3 = inlined_call_operand.vmem [shape: f32[11,32,1], index: 3, kind: input, shape index: {}]
  %s4 = inlined_call_operand.vmem [shape: f32[1,512], index: 4, kind: output, shape index: {}]
  %s5 = sld [smem:[#allocation0]]
  $region49: #{big_model_forward_fm.1} parent=0
    _
  %s7 = ssub.s32 1, %s5
  %s8 = scalar_select 0, %s7, %s5
  loop: start=0, step=1, limit=4
  $region2: #{big_model_forward_fm.1} parent=0 // loop_pre_header
    _
  $region3: #{big_model_forward_fm.1} parent=0 // loop_header
    %s10 = sphi 0, %s14
    %p11 = scmp.ge.s32.totalorder %s10, 4
    %s20 = sphi 0, %s22
    %s23 = sphi 0, %s20
    %s24 = sphi 0, %s23
    %s40 = sphi 0, %s24
    %s44 = sphi 0, %s44
    %s46 = sphi 0, %s44
    %s47 = sphi 0, %s46
    %s61 = sphi 0, %s47
    %s65 = sphi 0, %s65
    %s67 = sphi 0, %s65
    %s68 = sphi 0, %s67
    %s82 = sphi 0, %s68
    %s86 = sphi 0, %s86
    %s88 = sphi 0, %s86
    %s89 = sphi 0, %s88
    %s103 = sphi 0, %s89
    %s109 = sphi 0, %s111
    %s112 = sphi 0, %s109
    %s113 = sphi 0, %s112
    %s129 = sphi 0, %s113
  $region4: #{big_model_forward_fm.1} parent=0 // loop_header_branch
    %13 = sbr.rel (%p11) target = $region8
  $region5: #{big_model_forward_fm.1} parent=0 // loop_body
    %s15 = ssub.s32 %s10, 1
    %s16 = ssub.s32 %s10, 2
    %s17 = sadd.s32 %s10, 1
    %s18 = ssub.s32 %s10, %s17
    %p19 = scmp.eq.s32.totalorder %s18, 0
    %s21 = sadd.s32 %s20, 1
    %s22 = scalar_select %p19, %s20, %s21
    %p25 = pneg %p19
    %p26 = scmp.eq.s32.totalorder %s10, 1
    %p27 = por %p25, %p26
    %p28 = scmp.ne.s32.totalorder %s20, %s23
    %p29 = scmp.eq.s32.totalorder %s10, 0
    %p30 = por %p28, %p29
    %p31 = scmp.ne.s32.totalorder %s20, %s23
    %p32 = scmp.eq.s32.totalorder %s15, 1
    %p33 = por %p31, %p32
    %p34 = scmp.ne.s32.totalorder %s23, %s24
    %p35 = scmp.eq.s32.totalorder %s15, 0
    %p36 = por %p34, %p35
    %p37 = scmp.ne.s32.totalorder %s23, %s24
    %p38 = scmp.eq.s32.totalorder %s16, 1
    %p39 = por %p37, %p38
    %p41 = scmp.ne.s32.totalorder %s24, %s40
    %p42 = scmp.eq.s32.totalorder %s16, 0
    %p43 = por %p41, %p42
    %s45 = sadd.s32 %s44, 1
    %p48 = scmp.eq.s32.totalorder %s10, 1
    %p49 = scmp.ne.s32.totalorder %s44, %s46
    %p50 = scmp.eq.s32.totalorder %s10, 0
    %p51 = por %p49, %p50
    %p52 = scmp.ne.s32.totalorder %s44, %s46
    %p53 = scmp.eq.s32.totalorder %s15, 1
    %p54 = por %p52, %p53
    %p55 = scmp.ne.s32.totalorder %s46, %s47
    %p56 = scmp.eq.s32.totalorder %s15, 0
    %p57 = por %p55, %p56
    %p58 = scmp.ne.s32.totalorder %s46, %s47
    %p59 = scmp.eq.s32.totalorder %s16, 1
    %p60 = por %p58, %p59
    %p62 = scmp.ne.s32.totalorder %s47, %s61
    %p63 = scmp.eq.s32.totalorder %s16, 0
    %p64 = por %p62, %p63
    %s66 = sadd.s32 %s65, 1
    %p69 = scmp.eq.s32.totalorder %s10, 1
    %p70 = scmp.ne.s32.totalorder %s65, %s67
    %p71 = scmp.eq.s32.totalorder %s10, 0
    %p72 = por %p70, %p71
    %p73 = scmp.ne.s32.totalorder %s65, %s67
    %p74 = scmp.eq.s32.totalorder %s15, 1
    %p75 = por %p73, %p74
    %p76 = scmp.ne.s32.totalorder %s67, %s68
    %p77 = scmp.eq.s32.totalorder %s15, 0
    %p78 = por %p76, %p77
    %p79 = scmp.ne.s32.totalorder %s67, %s68
    %p80 = scmp.eq.s32.totalorder %s16, 1
    %p81 = por %p79, %p80
    %p83 = scmp.ne.s32.totalorder %s68, %s82
    %p84 = scmp.eq.s32.totalorder %s16, 0
    %p85 = por %p83, %p84
    %s87 = sadd.s32 %s86, 1
    %p90 = scmp.eq.s32.totalorder %s10, 1
    %p91 = scmp.ne.s32.totalorder %s86, %s88
    %p92 = scmp.eq.s32.totalorder %s10, 0
    %p93 = por %p91, %p92
    %p94 = scmp.ne.s32.totalorder %s86, %s88
    %p95 = scmp.eq.s32.totalorder %s15, 1
    %p96 = por %p94, %p95
    %p97 = scmp.ne.s32.totalorder %s88, %s89
    %p98 = scmp.eq.s32.totalorder %s15, 0
    %p99 = por %p97, %p98
    %p100 = scmp.ne.s32.totalorder %s88, %s89
    %p101 = scmp.eq.s32.totalorder %s16, 1
    %p102 = por %p100, %p101
    %p104 = scmp.ne.s32.totalorder %s89, %s103
    %p105 = scmp.eq.s32.totalorder %s16, 0
    %p106 = por %p104, %p105
    %s107 = ssub.s32 %s10, %s17
    %p108 = scmp.eq.s32.totalorder %s107, 0
    %s110 = sadd.s32 %s109, 1
    %s111 = scalar_select %p108, %s109, %s110
    %p114 = pneg %p108
    %p115 = scmp.eq.s32.totalorder %s10, 1
    %p116 = por %p114, %p115
    %p117 = scmp.ne.s32.totalorder %s109, %s112
    %p118 = scmp.eq.s32.totalorder %s10, 0
    %p119 = por %p117, %p118
    %p120 = scmp.ne.s32.totalorder %s109, %s112
    %p121 = scmp.eq.s32.totalorder %s15, 1
    %p122 = por %p120, %p121
    %p123 = scmp.ne.s32.totalorder %s112, %s113
    %p124 = scmp.eq.s32.totalorder %s15, 0
    %p125 = por %p123, %p124
    %p126 = scmp.ne.s32.totalorder %s112, %s113
    %p127 = scmp.eq.s32.totalorder %s16, 1
    %p128 = por %p126, %p127
    %p130 = scmp.ne.s32.totalorder %s113, %s129
    %p131 = scmp.eq.s32.totalorder %s16, 0
    %p132 = por %p130, %p131
    %p133 = scmp.le.s32.totalorder 1, %s10
    %p134 = scmp.lt.s32.totalorder %s10, 3
    %p135 = pnand %p133, %p134
    %p136 = pneg %p135
    // Predicated region
    $region9: #{big_model_forward_fm.1} parent=5 // pred_check
      _
    $region10: #{big_model_forward_fm.1} parent=5 // pred_check_branch
      %138 = sbr.rel (%p135) target = $region12
    $region11: #{big_model_forward_fm.1} parent=5 // pred_region
      %s139 = ssub.s32 %s10, 1
      // Predicated region
      $region13: #{big_model_forward_fm.1} parent=11 // pred_check
        %p140 = pneg %p57
      $region14: #{big_model_forward_fm.1} parent=11 // pred_check_branch
        %142 = sbr.rel (%p140) target = $region16
      $region15: #{big_model_forward_fm.1} parent=11 // pred_region
        _
      $region16: #{big_model_forward_fm.1} parent=11 // pred_fallthru
        _
      // Predicated region
      $region17: #{big_model_forward_fm.1} parent=11 // pred_check
        %p143 = pneg %p78
      $region18: #{big_model_forward_fm.1} parent=11 // pred_check_branch
        %145 = sbr.rel (%p143) target = $region20
      $region19: #{big_model_forward_fm.1} parent=11 // pred_region
        _
      $region20: #{big_model_forward_fm.1} parent=11 // pred_fallthru
        _
      // Predicated region
      $region21: #{big_model_forward_fm.1} parent=11 // pred_check
        %p146 = pneg %p99
      $region22: #{big_model_forward_fm.1} parent=11 // pred_check_branch
        %148 = sbr.rel (%p146) target = $region24
      $region23: #{big_model_forward_fm.1} parent=11 // pred_region
        _
      $region24: #{big_model_forward_fm.1} parent=11 // pred_fallthru
        _
    $region12: #{big_model_forward_fm.1} parent=5 // pred_fallthru
      _
    %p149 = scmp.lt.s32.totalorder %s10, 2
    // Predicated region
    $region25: #{big_model_forward_fm.1} parent=5 // pred_check
      %p150 = pneg %p149
    $region26: #{big_model_forward_fm.1} parent=5 // pred_check_branch
      %152 = sbr.rel (%p150) target = $region28
    $region27: #{big_model_forward_fm.1} parent=5 // pred_region
      // Predicated region
      $region29: #{big_model_forward_fm.1} parent=27 // pred_check
        %p153 = pneg %p30
      $region30: #{big_model_forward_fm.1} parent=27 // pred_check_branch
        %155 = sbr.rel (%p153) target = $region32
      $region31: #{big_model_forward_fm.1} parent=27 // pred_region
        %s156 = smul.u32 2, %s10
        %p157 = scmp.lt.s32.totalorder %s156, 3
        %s158 = scalar_select %p157, %s156, 3
        %s159 = smul.addr %s158, 8
        %s160 = scalar_lea.vmem %s0, %s159
        %s161 = smul.u32 2, %s10
      $region32: #{big_model_forward_fm.1} parent=27 // pred_fallthru
        _
    $region28: #{big_model_forward_fm.1} parent=5 // pred_fallthru
      _
    %p162 = scmp.le.s32.totalorder 1, %s10
    %p163 = scmp.lt.s32.totalorder %s10, 3
    %p164 = pnand %p162, %p163
    %p165 = pneg %p164
    // Predicated region
    $region33: #{big_model_forward_fm.1} parent=5 // pred_check
      _
    $region34: #{big_model_forward_fm.1} parent=5 // pred_check_branch
      %167 = sbr.rel (%p164) target = $region36
    $region35: #{big_model_forward_fm.1} parent=5 // pred_region
      %s168 = ssub.s32 %s10, 1
      %s169 = smul.u32 2, %s15
      %p170 = scmp.lt.s32.totalorder %s169, 3
      %s171 = scalar_select %p170, %s169, 3
      %s172 = smul.addr %s171, 8
      %s173 = scalar_lea.vmem %s0, %s172
      %p174 = pneg %p36
      %p175 = pneg %p33
      %p176 = pneg %p57
      %p177 = pneg %p54
      %p178 = pneg %p78
      %p179 = pneg %p75
      %p180 = pneg %p99
      %p181 = pneg %p96
      %p182 = pneg %p125
      %p183 = pneg %p122
      %s184 = smul.u32 2, %s15
      %p185 = scmp.lt.s32.totalorder %s184, 3
      %s186 = scalar_select %p185, %s184, 3
      %s187 = scalar_lea.vmem %s4, %s186
      %s188 = smul.u32 2, %s15
      %p189 = scmp.lt.s32.totalorder %s188, 3
      %s190 = scalar_select %p189, %s188, 3
      %s191 = smul.addr %s190, 8
      %s192 = scalar_lea.vmem %s0, %s191
      %s193 = smul.u32 2, %s15
      %s194 = smul.u32 2, %s15
      %p195 = scmp.lt.s32.totalorder %s194, 3
      %s196 = scalar_select %p195, %s194, 3
      %s197 = scalar_lea.vmem %s4, %s196
      %s198 = smul.u32 2, %s15
      %v199 = vld [vmem:[%s1] sm:$0xff]
      %v200 = vld [vmem:[%s1 + $0x8] sm:$0xff]
      %v201 = vld [vmem:[%s1 + $0x10] sm:$0xff]
      %v202 = vld [vmem:[%s1 + $0x18] sm:$0xff]
      %v203 = vld [vmem:[%s192] sm:$0xff]
      %v204 = vld [vmem:[%s192 + $0x8] sm:$0xff]
      %v205 = vld [vmem:[%s3] sm:$0xff]
      %v206 = vld [vmem:[%s3 + $0x8] sm:$0xff]
      %v207 = vld [vmem:[%s3 + $0x10] sm:$0xff]
      %v208 = vld [vmem:[%s3 + $0x18] sm:$0xff]
      %210 = vset.pattern.permute.xlu0 0
      %211 = vperm.xlu0 %210, %v205
      %v212 = vpop.permute.xlu0 %211
      %215 = vset.pattern.permute.xlu0 0
      %216 = vperm.xlu0 %215, %v206
      %v217 = vpop.permute.xlu0 %216
      %220 = vset.pattern.permute.xlu0 0
      %221 = vperm.xlu0 %220, %v207
      %v222 = vpop.permute.xlu0 %221
      %225 = vset.pattern.permute.xlu0 0
      %226 = vperm.xlu0 %225, %v208
      %v227 = vpop.permute.xlu0 %226
      %vm229 = vcmask 64512
      %v231 = vsel %vm229, %v199, 0
      %v234 = vsel %vm229, %v200, 0
      %v237 = vsel %vm229, %v201, 0
      %v240 = vsel %vm229, %v202, 0
      %242 = vmatpush.msra.mxu0 0.0
      %243 = vmatpush.msra.mxu0 0.0
      %244 = vmatpush.msra.mxu0 0.0
      %245 = vmatpush.msra.mxu0 0.0
      %246 = vmatpush.msra.mxu0 0.0
      %247 = vmatpush.msra.mxu0 0.0
      %248 = vmatpush.msra.mxu0 0.0
      %249 = vmatpush.msra.mxu0 0.0
      %250 = vmatpush.msra.mxu0 0.0
      %251 = vmatpush.msra.mxu0 0.0
      %252 = vmatpush.msra.mxu0 0.0
      %253 = vmatpush.msra.mxu0 0.0
      %254 = vmatpush.msra.mxu0 0.0
      %255 = vmatpush.msra.mxu0 0.0
      %256 = vmatpush.msra.mxu0 0.0
      %257 = vmatpush.msra.mxu0 %v203
      %258 = vmatmul.f32.gmra.mxu0 %v231
      %v259 = vpop.f32.mrf.mxu0
      %v260 = vadd.f32 %v212, %v259
      %261 = vmatmul.f32.gmra.mxu0 %v234
      %v262 = vpop.f32.mrf.mxu0
      %v263 = vadd.f32 %v217, %v262
      %264 = vmatmul.f32.gmra.mxu0 %v237
      %v265 = vpop.f32.mrf.mxu0
      %v266 = vadd.f32 %v222, %v265
      %267 = vmatmul.f32.gmra.mxu0 %v240
      %v268 = vpop.f32.mrf.mxu0
      %v269 = vadd.f32 %v227, %v268
      %270 = vdwg.mxu0
      %271 = vmatpush.msra.mxu0 0.0
      %272 = vmatpush.msra.mxu0 0.0
      %273 = vmatpush.msra.mxu0 0.0
      %274 = vmatpush.msra.mxu0 0.0
      %275 = vmatpush.msra.mxu0 0.0
      %276 = vmatpush.msra.mxu0 0.0
      %277 = vmatpush.msra.mxu0 0.0
      %278 = vmatpush.msra.mxu0 0.0
      %279 = vmatpush.msra.mxu0 0.0
      %280 = vmatpush.msra.mxu0 0.0
      %281 = vmatpush.msra.mxu0 0.0
      %282 = vmatpush.msra.mxu0 0.0
      %283 = vmatpush.msra.mxu0 0.0
      %284 = vmatpush.msra.mxu0 0.0
      %285 = vmatpush.msra.mxu0 0.0
      %286 = vmatpush.msra.mxu0 %v204
      %287 = vmatmul.f32.gmra.mxu0 %v231
      %v288 = vpop.f32.mrf.mxu0
      %v289 = vadd.f32 %v212, %v288
      %290 = vmatmul.f32.gmra.mxu0 %v234
      %v291 = vpop.f32.mrf.mxu0
      %v292 = vadd.f32 %v217, %v291
      %293 = vmatmul.f32.gmra.mxu0 %v237
      %v294 = vpop.f32.mrf.mxu0
      %v295 = vadd.f32 %v222, %v294
      %296 = vmatmul.f32.gmra.mxu0 %v240
      %v297 = vpop.f32.mrf.mxu0
      %v298 = vadd.f32 %v227, %v297
      %299 = vdwg.mxu0
      %v300 = vmax.f32 %v260, 0.0
      %v301 = vmax.f32 %v289, 0.0
      %v302 = vmax.f32 %v263, 0.0
      %v303 = vmax.f32 %v292, 0.0
      %v304 = vmax.f32 %v266, 0.0
      %v305 = vmax.f32 %v295, 0.0
      %v306 = vmax.f32 %v269, 0.0
      %v307 = vmax.f32 %v298, 0.0
      %v308 = vld [vmem:[%s2] sm:$0xff]
      %v309 = vld [vmem:[%s2 + $0x8] sm:$0xff]
      %v310 = vld [vmem:[%s2 + $0x10] sm:$0xff]
      %v311 = vld [vmem:[%s2 + $0x18] sm:$0xff]
      %s312 = scalar_lea.vmem %s3, 32
      %v313 = vld [vmem:[%s312] sm:$0xff]
      %v314 = vld [vmem:[%s312 + $0x8] sm:$0xff]
      %v315 = vld [vmem:[%s312 + $0x10] sm:$0xff]
      %v316 = vld [vmem:[%s312 + $0x18] sm:$0xff]
      %318 = vset.pattern.permute.xlu0 0
      %319 = vperm.xlu0 %318, %v313
      %v320 = vpop.permute.xlu0 %319
      %323 = vset.pattern.permute.xlu0 0
      %324 = vperm.xlu0 %323, %v314
      %v325 = vpop.permute.xlu0 %324
      %328 = vset.pattern.permute.xlu0 0
      %329 = vperm.xlu0 %328, %v315
      %v330 = vpop.permute.xlu0 %329
      %333 = vset.pattern.permute.xlu0 0
      %334 = vperm.xlu0 %333, %v316
      %v335 = vpop.permute.xlu0 %334
      %vm337 = vcmask 261120
      %v339 = vsel %vm337, %v308, 0
      %v342 = vsel %vm337, %v309, 0
      %v345 = vsel %vm337, %v310, 0
      %v348 = vsel %vm337, %v311, 0
      %350 = vmatpush.msra.mxu0 0.0
      %351 = vmatpush.msra.mxu0 0.0
      %352 = vmatpush.msra.mxu0 0.0
      %353 = vmatpush.msra.mxu0 0.0
      %354 = vmatpush.msra.mxu0 0.0
      %355 = vmatpush.msra.mxu0 0.0
      %356 = vmatpush.msra.mxu0 0.0
      %357 = vmatpush.msra.mxu0 0.0
      %358 = vmatpush.msra.mxu0 0.0
      %359 = vmatpush.msra.mxu0 0.0
      %360 = vmatpush.msra.mxu0 0.0
      %361 = vmatpush.msra.mxu0 0.0
      %362 = vmatpush.msra.mxu0 %v306
      %363 = vmatpush.msra.mxu0 %v304
      %364 = vmatpush.msra.mxu0 %v302
      %365 = vmatpush.msra.mxu0 %v300
      %366 = vmatmul.f32.gmra.mxu0 %v339
      %v367 = vpop.f32.mrf.mxu0
      %v368 = vadd.f32 %v320, %v367
      %369 = vmatmul.f32.gmra.mxu0 %v342
      %v370 = vpop.f32.mrf.mxu0
      %v371 = vadd.f32 %v325, %v370
      %372 = vmatmul.f32.gmra.mxu0 %v345
      %v373 = vpop.f32.mrf.mxu0
      %v374 = vadd.f32 %v330, %v373
      %375 = vmatmul.f32.gmra.mxu0 %v348
      %v376 = vpop.f32.mrf.mxu0
      %v377 = vadd.f32 %v335, %v376
      %378 = vdwg.mxu0
      %379 = vmatpush.msra.mxu0 0.0
      %380 = vmatpush.msra.mxu0 0.0
      %381 = vmatpush.msra.mxu0 0.0
      %382 = vmatpush.msra.mxu0 0.0
      %383 = vmatpush.msra.mxu0 0.0
      %384 = vmatpush.msra.mxu0 0.0
      %385 = vmatpush.msra.mxu0 0.0
      %386 = vmatpush.msra.mxu0 0.0
      %387 = vmatpush.msra.mxu0 0.0
      %388 = vmatpush.msra.mxu0 0.0
      %389 = vmatpush.msra.mxu0 0.0
      %390 = vmatpush.msra.mxu0 0.0
      %391 = vmatpush.msra.mxu0 %v307
      %392 = vmatpush.msra.mxu0 %v305
      %393 = vmatpush.msra.mxu0 %v303
      %394 = vmatpush.msra.mxu0 %v301
      %395 = vmatmul.f32.gmra.mxu0 %v339
      %v396 = vpop.f32.mrf.mxu0
      %v397 = vadd.f32 %v320, %v396
      %398 = vmatmul.f32.gmra.mxu0 %v342
      %v399 = vpop.f32.mrf.mxu0
      %v400 = vadd.f32 %v325, %v399
      %401 = vmatmul.f32.gmra.mxu0 %v345
      %v402 = vpop.f32.mrf.mxu0
      %v403 = vadd.f32 %v330, %v402
      %404 = vmatmul.f32.gmra.mxu0 %v348
      %v405 = vpop.f32.mrf.mxu0
      %v406 = vadd.f32 %v335, %v405
      %407 = vdwg.mxu0
      %v408 = vmax.f32 %v368, 0.0
      %v409 = vmax.f32 %v397, 0.0
      %v410 = vmax.f32 %v371, 0.0
      %v411 = vmax.f32 %v400, 0.0
      %v412 = vmax.f32 %v374, 0.0
      %v413 = vmax.f32 %v403, 0.0
      %v414 = vmax.f32 %v377, 0.0
      %v415 = vmax.f32 %v406, 0.0
      %s416 = scalar_lea.vmem %s2, 32
      %v417 = vld [vmem:[%s416] sm:$0xff]
      %v418 = vld [vmem:[%s416 + $0x8] sm:$0xff]
      %v419 = vld [vmem:[%s416 + $0x10] sm:$0xff]
      %v420 = vld [vmem:[%s416 + $0x18] sm:$0xff]
      %s421 = scalar_lea.vmem %s3, 64
      %v422 = vld [vmem:[%s421] sm:$0xff]
      %v423 = vld [vmem:[%s421 + $0x8] sm:$0xff]
      %v424 = vld [vmem:[%s421 + $0x10] sm:$0xff]
      %v425 = vld [vmem:[%s421 + $0x18] sm:$0xff]
      %427 = vset.pattern.permute.xlu0 0
      %428 = vperm.xlu0 %427, %v422
      %v429 = vpop.permute.xlu0 %428
      %432 = vset.pattern.permute.xlu0 0
      %433 = vperm.xlu0 %432, %v423
      %v434 = vpop.permute.xlu0 %433
      %437 = vset.pattern.permute.xlu0 0
      %438 = vperm.xlu0 %437, %v424
      %v439 = vpop.permute.xlu0 %438
      %442 = vset.pattern.permute.xlu0 0
      %443 = vperm.xlu0 %442, %v425
      %v444 = vpop.permute.xlu0 %443
      %v447 = vsel %vm337, %v417, 0
      %v450 = vsel %vm337, %v418, 0
      %v453 = vsel %vm337, %v419, 0
      %v456 = vsel %vm337, %v420, 0
      %458 = vmatpush.msra.mxu0 0.0
      %459 = vmatpush.msra.mxu0 0.0
      %460 = vmatpush.msra.mxu0 0.0
      %461 = vmatpush.msra.mxu0 0.0
      %462 = vmatpush.msra.mxu0 0.0
      %463 = vmatpush.msra.mxu0 0.0
      %464 = vmatpush.msra.mxu0 0.0
      %465 = vmatpush.msra.mxu0 0.0
      %466 = vmatpush.msra.mxu0 0.0
      %467 = vmatpush.msra.mxu0 0.0
      %468 = vmatpush.msra.mxu0 0.0
      %469 = vmatpush.msra.mxu0 0.0
      %470 = vmatpush.msra.mxu0 %v414
      %471 = vmatpush.msra.mxu0 %v412
      %472 = vmatpush.msra.mxu0 %v410
      %473 = vmatpush.msra.mxu0 %v408
      %474 = vmatmul.f32.gmra.mxu0 %v447
      %v475 = vpop.f32.mrf.mxu0
      %v476 = vadd.f32 %v429, %v475
      %477 = vmatmul.f32.gmra.mxu0 %v450
      %v478 = vpop.f32.mrf.mxu0
      %v479 = vadd.f32 %v434, %v478
      %480 = vmatmul.f32.gmra.mxu0 %v453
      %v481 = vpop.f32.mrf.mxu0
      %v482 = vadd.f32 %v439, %v481
      %483 = vmatmul.f32.gmra.mxu0 %v456
      %v484 = vpop.f32.mrf.mxu0
      %v485 = vadd.f32 %v444, %v484
      %486 = vdwg.mxu0
      %487 = vmatpush.msra.mxu0 0.0
      %488 = vmatpush.msra.mxu0 0.0
      %489 = vmatpush.msra.mxu0 0.0
      %490 = vmatpush.msra.mxu0 0.0
      %491 = vmatpush.msra.mxu0 0.0
      %492 = vmatpush.msra.mxu0 0.0
      %493 = vmatpush.msra.mxu0 0.0
      %494 = vmatpush.msra.mxu0 0.0
      %495 = vmatpush.msra.mxu0 0.0
      %496 = vmatpush.msra.mxu0 0.0
      %497 = vmatpush.msra.mxu0 0.0
      %498 = vmatpush.msra.mxu0 0.0
      %499 = vmatpush.msra.mxu0 %v415
      %500 = vmatpush.msra.mxu0 %v413
      %501 = vmatpush.msra.mxu0 %v411
      %502 = vmatpush.msra.mxu0 %v409
      %503 = vmatmul.f32.gmra.mxu0 %v447
      %v504 = vpop.f32.mrf.mxu0
      %v505 = vadd.f32 %v429, %v504
      %506 = vmatmul.f32.gmra.mxu0 %v450
      %v507 = vpop.f32.mrf.mxu0
      %v508 = vadd.f32 %v434, %v507
      %509 = vmatmul.f32.gmra.mxu0 %v453
      %v510 = vpop.f32.mrf.mxu0
      %v511 = vadd.f32 %v439, %v510
      %512 = vmatmul.f32.gmra.mxu0 %v456
      %v513 = vpop.f32.mrf.mxu0
      %v514 = vadd.f32 %v444, %v513
      %515 = vdwg.mxu0
      %v516 = vmax.f32 %v476, 0.0
      %v517 = vmax.f32 %v505, 0.0
      %v518 = vmax.f32 %v479, 0.0
      %v519 = vmax.f32 %v508, 0.0
      %v520 = vmax.f32 %v482, 0.0
      %v521 = vmax.f32 %v511, 0.0
      %v522 = vmax.f32 %v485, 0.0
      %v523 = vmax.f32 %v514, 0.0
      %s524 = scalar_lea.vmem %s2, 64
      %v525 = vld [vmem:[%s524] sm:$0xff]
      %v526 = vld [vmem:[%s524 + $0x8] sm:$0xff]
      %v527 = vld [vmem:[%s524 + $0x10] sm:$0xff]
      %v528 = vld [vmem:[%s524 + $0x18] sm:$0xff]
      %s529 = scalar_lea.vmem %s3, 96
      %v530 = vld [vmem:[%s529] sm:$0xff]
      %v531 = vld [vmem:[%s529 + $0x8] sm:$0xff]
      %v532 = vld [vmem:[%s529 + $0x10] sm:$0xff]
      %v533 = vld [vmem:[%s529 + $0x18] sm:$0xff]
      %535 = vset.pattern.permute.xlu0 0
      %536 = vperm.xlu0 %535, %v530
      %v537 = vpop.permute.xlu0 %536
      %540 = vset.pattern.permute.xlu0 0
      %541 = vperm.xlu0 %540, %v531
      %v542 = vpop.permute.xlu0 %541
      %545 = vset.pattern.permute.xlu0 0
      %546 = vperm.xlu0 %545, %v532
      %v547 = vpop.permute.xlu0 %546
      %550 = vset.pattern.permute.xlu0 0
      %551 = vperm.xlu0 %550, %v533
      %v552 = vpop.permute.xlu0 %551
      %v555 = vsel %vm337, %v525, 0
      %v558 = vsel %vm337, %v526, 0
      %v561 = vsel %vm337, %v527, 0
      %v564 = vsel %vm337, %v528, 0
      %566 = vmatpush.msra.mxu0 0.0
      %567 = vmatpush.msra.mxu0 0.0
      %568 = vmatpush.msra.mxu0 0.0
      %569 = vmatpush.msra.mxu0 0.0
      %570 = vmatpush.msra.mxu0 0.0
      %571 = vmatpush.msra.mxu0 0.0
      %572 = vmatpush.msra.mxu0 0.0
      %573 = vmatpush.msra.mxu0 0.0
      %574 = vmatpush.msra.mxu0 0.0
      %575 = vmatpush.msra.mxu0 0.0
      %576 = vmatpush.msra.mxu0 0.0
      %577 = vmatpush.msra.mxu0 0.0
      %578 = vmatpush.msra.mxu0 %v522
      %579 = vmatpush.msra.mxu0 %v520
      %580 = vmatpush.msra.mxu0 %v518
      %581 = vmatpush.msra.mxu0 %v516
      %582 = vmatmul.f32.gmra.mxu0 %v555
      %v583 = vpop.f32.mrf.mxu0
      %v584 = vadd.f32 %v537, %v583
      %585 = vmatmul.f32.gmra.mxu0 %v558
      %v586 = vpop.f32.mrf.mxu0
      %v587 = vadd.f32 %v542, %v586
      %588 = vmatmul.f32.gmra.mxu0 %v561
      %v589 = vpop.f32.mrf.mxu0
      %v590 = vadd.f32 %v547, %v589
      %591 = vmatmul.f32.gmra.mxu0 %v564
      %v592 = vpop.f32.mrf.mxu0
      %v593 = vadd.f32 %v552, %v592
      %594 = vdwg.mxu0
      %595 = vmatpush.msra.mxu0 0.0
      %596 = vmatpush.msra.mxu0 0.0
      %597 = vmatpush.msra.mxu0 0.0
      %598 = vmatpush.msra.mxu0 0.0
      %599 = vmatpush.msra.mxu0 0.0
      %600 = vmatpush.msra.mxu0 0.0
      %601 = vmatpush.msra.mxu0 0.0
      %602 = vmatpush.msra.mxu0 0.0
      %603 = vmatpush.msra.mxu0 0.0
      %604 = vmatpush.msra.mxu0 0.0
      %605 = vmatpush.msra.mxu0 0.0
      %606 = vmatpush.msra.mxu0 0.0
      %607 = vmatpush.msra.mxu0 %v523
      %608 = vmatpush.msra.mxu0 %v521
      %609 = vmatpush.msra.mxu0 %v519
      %610 = vmatpush.msra.mxu0 %v517
      %611 = vmatmul.f32.gmra.mxu0 %v555
      %v612 = vpop.f32.mrf.mxu0
      %v613 = vadd.f32 %v537, %v612
      %614 = vmatmul.f32.gmra.mxu0 %v558
      %v615 = vpop.f32.mrf.mxu0
      %v616 = vadd.f32 %v542, %v615
      %617 = vmatmul.f32.gmra.mxu0 %v561
      %v618 = vpop.f32.mrf.mxu0
      %v619 = vadd.f32 %v547, %v618
      %620 = vmatmul.f32.gmra.mxu0 %v564
      %v621 = vpop.f32.mrf.mxu0
      %v622 = vadd.f32 %v552, %v621
      %623 = vdwg.mxu0
      %v624 = vmax.f32 %v584, 0.0
      %v625 = vmax.f32 %v613, 0.0
      %v626 = vmax.f32 %v587, 0.0
      %v627 = vmax.f32 %v616, 0.0
      %v628 = vmax.f32 %v590, 0.0
      %v629 = vmax.f32 %v619, 0.0
      %v630 = vmax.f32 %v593, 0.0
      %v631 = vmax.f32 %v622, 0.0
      %s632 = scalar_lea.vmem %s2, 96
      %v633 = vld [vmem:[%s632] sm:$0xff]
      %v634 = vld [vmem:[%s632 + $0x8] sm:$0xff]
      %v635 = vld [vmem:[%s632 + $0x10] sm:$0xff]
      %v636 = vld [vmem:[%s632 + $0x18] sm:$0xff]
      %s637 = scalar_lea.vmem %s3, 128
      %v638 = vld [vmem:[%s637] sm:$0xff]
      %v639 = vld [vmem:[%s637 + $0x8] sm:$0xff]
      %v640 = vld [vmem:[%s637 + $0x10] sm:$0xff]
      %v641 = vld [vmem:[%s637 + $0x18] sm:$0xff]
      %643 = vset.pattern.permute.xlu0 0
      %644 = vperm.xlu0 %643, %v638
      %v645 = vpop.permute.xlu0 %644
      %648 = vset.pattern.permute.xlu0 0
      %649 = vperm.xlu0 %648, %v639
      %v650 = vpop.permute.xlu0 %649
      %653 = vset.pattern.permute.xlu0 0
      %654 = vperm.xlu0 %653, %v640
      %v655 = vpop.permute.xlu0 %654
      %658 = vset.pattern.permute.xlu0 0
      %659 = vperm.xlu0 %658, %v641
      %v660 = vpop.permute.xlu0 %659
      %v663 = vsel %vm337, %v633, 0
      %v666 = vsel %vm337, %v634, 0
      %v669 = vsel %vm337, %v635, 0
      %v672 = vsel %vm337, %v636, 0
      %674 = vmatpush.msra.mxu0 0.0
      %675 = vmatpush.msra.mxu0 0.0
      %676 = vmatpush.msra.mxu0 0.0
      %677 = vmatpush.msra.mxu0 0.0
      %678 = vmatpush.msra.mxu0 0.0
      %679 = vmatpush.msra.mxu0 0.0
      %680 = vmatpush.msra.mxu0 0.0
      %681 = vmatpush.msra.mxu0 0.0
      %682 = vmatpush.msra.mxu0 0.0
      %683 = vmatpush.msra.mxu0 0.0
      %684 = vmatpush.msra.mxu0 0.0
      %685 = vmatpush.msra.mxu0 0.0
      %686 = vmatpush.msra.mxu0 %v630
      %687 = vmatpush.msra.mxu0 %v628
      %688 = vmatpush.msra.mxu0 %v626
      %689 = vmatpush.msra.mxu0 %v624
      %690 = vmatmul.f32.gmra.mxu0 %v663
      %v691 = vpop.f32.mrf.mxu0
      %v692 = vadd.f32 %v645, %v691
      %693 = vmatmul.f32.gmra.mxu0 %v666
      %v694 = vpop.f32.mrf.mxu0
      %v695 = vadd.f32 %v650, %v694
      %696 = vmatmul.f32.gmra.mxu0 %v669
      %v697 = vpop.f32.mrf.mxu0
      %v698 = vadd.f32 %v655, %v697
      %699 = vmatmul.f32.gmra.mxu0 %v672
      %v700 = vpop.f32.mrf.mxu0
      %v701 = vadd.f32 %v660, %v700
      %702 = vdwg.mxu0
      %703 = vmatpush.msra.mxu0 0.0
      %704 = vmatpush.msra.mxu0 0.0
      %705 = vmatpush.msra.mxu0 0.0
      %706 = vmatpush.msra.mxu0 0.0
      %707 = vmatpush.msra.mxu0 0.0
      %708 = vmatpush.msra.mxu0 0.0
      %709 = vmatpush.msra.mxu0 0.0
      %710 = vmatpush.msra.mxu0 0.0
      %711 = vmatpush.msra.mxu0 0.0
      %712 = vmatpush.msra.mxu0 0.0
      %713 = vmatpush.msra.mxu0 0.0
      %714 = vmatpush.msra.mxu0 0.0
      %715 = vmatpush.msra.mxu0 %v631
      %716 = vmatpush.msra.mxu0 %v629
      %717 = vmatpush.msra.mxu0 %v627
      %718 = vmatpush.msra.mxu0 %v625
      %719 = vmatmul.f32.gmra.mxu0 %v663
      %v720 = vpop.f32.mrf.mxu0
      %v721 = vadd.f32 %v645, %v720
      %722 = vmatmul.f32.gmra.mxu0 %v666
      %v723 = vpop.f32.mrf.mxu0
      %v724 = vadd.f32 %v650, %v723
      %725 = vmatmul.f32.gmra.mxu0 %v669
      %v726 = vpop.f32.mrf.mxu0
      %v727 = vadd.f32 %v655, %v726
      %728 = vmatmul.f32.gmra.mxu0 %v672
      %v729 = vpop.f32.mrf.mxu0
      %v730 = vadd.f32 %v660, %v729
      %731 = vdwg.mxu0
      %v732 = vmax.f32 %v692, 0.0
      %v733 = vmax.f32 %v721, 0.0
      %v734 = vmax.f32 %v695, 0.0
      %v735 = vmax.f32 %v724, 0.0
      %v736 = vmax.f32 %v698, 0.0
      %v737 = vmax.f32 %v727, 0.0
      %v738 = vmax.f32 %v701, 0.0
      %v739 = vmax.f32 %v730, 0.0
      %s740 = scalar_lea.vmem %s2, 128
      %v741 = vld [vmem:[%s740] sm:$0xff]
      %v742 = vld [vmem:[%s740 + $0x8] sm:$0xff]
      %v743 = vld [vmem:[%s740 + $0x10] sm:$0xff]
      %v744 = vld [vmem:[%s740 + $0x18] sm:$0xff]
      %s745 = scalar_lea.vmem %s3, 160
      %v746 = vld [vmem:[%s745] sm:$0xff]
      %v747 = vld [vmem:[%s745 + $0x8] sm:$0xff]
      %v748 = vld [vmem:[%s745 + $0x10] sm:$0xff]
      %v749 = vld [vmem:[%s745 + $0x18] sm:$0xff]
      %751 = vset.pattern.permute.xlu0 0
      %752 = vperm.xlu0 %751, %v746
      %v753 = vpop.permute.xlu0 %752
      %756 = vset.pattern.permute.xlu0 0
      %757 = vperm.xlu0 %756, %v747
      %v758 = vpop.permute.xlu0 %757
      %761 = vset.pattern.permute.xlu0 0
      %762 = vperm.xlu0 %761, %v748
      %v763 = vpop.permute.xlu0 %762
      %766 = vset.pattern.permute.xlu0 0
      %767 = vperm.xlu0 %766, %v749
      %v768 = vpop.permute.xlu0 %767
      %v771 = vsel %vm337, %v741, 0
      %v774 = vsel %vm337, %v742, 0
      %v777 = vsel %vm337, %v743, 0
      %v780 = vsel %vm337, %v744, 0
      %782 = vmatpush.msra.mxu0 0.0
      %783 = vmatpush.msra.mxu0 0.0
      %784 = vmatpush.msra.mxu0 0.0
      %785 = vmatpush.msra.mxu0 0.0
      %786 = vmatpush.msra.mxu0 0.0
      %787 = vmatpush.msra.mxu0 0.0
      %788 = vmatpush.msra.mxu0 0.0
      %789 = vmatpush.msra.mxu0 0.0
      %790 = vmatpush.msra.mxu0 0.0
      %791 = vmatpush.msra.mxu0 0.0
      %792 = vmatpush.msra.mxu0 0.0
      %793 = vmatpush.msra.mxu0 0.0
      %794 = vmatpush.msra.mxu0 %v738
      %795 = vmatpush.msra.mxu0 %v736
      %796 = vmatpush.msra.mxu0 %v734
      %797 = vmatpush.msra.mxu0 %v732
      %798 = vmatmul.f32.gmra.mxu0 %v771
      %v799 = vpop.f32.mrf.mxu0
      %v800 = vadd.f32 %v753, %v799
      %801 = vmatmul.f32.gmra.mxu0 %v774
      %v802 = vpop.f32.mrf.mxu0
      %v803 = vadd.f32 %v758, %v802
      %804 = vmatmul.f32.gmra.mxu0 %v777
      %v805 = vpop.f32.mrf.mxu0
      %v806 = vadd.f32 %v763, %v805
      %807 = vmatmul.f32.gmra.mxu0 %v780
      %v808 = vpop.f32.mrf.mxu0
      %v809 = vadd.f32 %v768, %v808
      %810 = vdwg.mxu0
      %811 = vmatpush.msra.mxu0 0.0
      %812 = vmatpush.msra.mxu0 0.0
      %813 = vmatpush.msra.mxu0 0.0
      %814 = vmatpush.msra.mxu0 0.0
      %815 = vmatpush.msra.mxu0 0.0
      %816 = vmatpush.msra.mxu0 0.0
      %817 = vmatpush.msra.mxu0 0.0
      %818 = vmatpush.msra.mxu0 0.0
      %819 = vmatpush.msra.mxu0 0.0
      %820 = vmatpush.msra.mxu0 0.0
      %821 = vmatpush.msra.mxu0 0.0
      %822 = vmatpush.msra.mxu0 0.0
      %823 = vmatpush.msra.mxu0 %v739
      %824 = vmatpush.msra.mxu0 %v737
      %825 = vmatpush.msra.mxu0 %v735
      %826 = vmatpush.msra.mxu0 %v733
      %827 = vmatmul.f32.gmra.mxu0 %v771
      %v828 = vpop.f32.mrf.mxu0
      %v829 = vadd.f32 %v753, %v828
      %830 = vmatmul.f32.gmra.mxu0 %v774
      %v831 = vpop.f32.mrf.mxu0
      %v832 = vadd.f32 %v758, %v831
      %833 = vmatmul.f32.gmra.mxu0 %v777
      %v834 = vpop.f32.mrf.mxu0
      %v835 = vadd.f32 %v763, %v834
      %836 = vmatmul.f32.gmra.mxu0 %v780
      %v837 = vpop.f32.mrf.mxu0
      %v838 = vadd.f32 %v768, %v837
      %839 = vdwg.mxu0
      %v840 = vmax.f32 %v800, 0.0
      %v841 = vmax.f32 %v829, 0.0
      %v842 = vmax.f32 %v803, 0.0
      %v843 = vmax.f32 %v832, 0.0
      %v844 = vmax.f32 %v806, 0.0
      %v845 = vmax.f32 %v835, 0.0
      %v846 = vmax.f32 %v809, 0.0
      %v847 = vmax.f32 %v838, 0.0
      %s848 = scalar_lea.vmem %s2, 160
      %v849 = vld [vmem:[%s848] sm:$0xff]
      %v850 = vld [vmem:[%s848 + $0x8] sm:$0xff]
      %v851 = vld [vmem:[%s848 + $0x10] sm:$0xff]
      %v852 = vld [vmem:[%s848 + $0x18] sm:$0xff]
      %s853 = scalar_lea.vmem %s3, 192
      %v854 = vld [vmem:[%s853] sm:$0xff]
      %v855 = vld [vmem:[%s853 + $0x8] sm:$0xff]
      %v856 = vld [vmem:[%s853 + $0x10] sm:$0xff]
      %v857 = vld [vmem:[%s853 + $0x18] sm:$0xff]
      %859 = vset.pattern.permute.xlu0 0
      %860 = vperm.xlu0 %859, %v854
      %v861 = vpop.permute.xlu0 %860
      %864 = vset.pattern.permute.xlu0 0
      %865 = vperm.xlu0 %864, %v855
      %v866 = vpop.permute.xlu0 %865
      %869 = vset.pattern.permute.xlu0 0
      %870 = vperm.xlu0 %869, %v856
      %v871 = vpop.permute.xlu0 %870
      %874 = vset.pattern.permute.xlu0 0
      %875 = vperm.xlu0 %874, %v857
      %v876 = vpop.permute.xlu0 %875
      %v879 = vsel %vm337, %v849, 0
      %v882 = vsel %vm337, %v850, 0
      %v885 = vsel %vm337, %v851, 0
      %v888 = vsel %vm337, %v852, 0
      %890 = vmatpush.msra.mxu0 0.0
      %891 = vmatpush.msra.mxu0 0.0
      %892 = vmatpush.msra.mxu0 0.0
      %893 = vmatpush.msra.mxu0 0.0
      %894 = vmatpush.msra.mxu0 0.0
      %895 = vmatpush.msra.mxu0 0.0
      %896 = vmatpush.msra.mxu0 0.0
      %897 = vmatpush.msra.mxu0 0.0
      %898 = vmatpush.msra.mxu0 0.0
      %899 = vmatpush.msra.mxu0 0.0
      %900 = vmatpush.msra.mxu0 0.0
      %901 = vmatpush.msra.mxu0 0.0
      %902 = vmatpush.msra.mxu0 %v846
      %903 = vmatpush.msra.mxu0 %v844
      %904 = vmatpush.msra.mxu0 %v842
      %905 = vmatpush.msra.mxu0 %v840
      %906 = vmatmul.f32.gmra.mxu0 %v879
      %v907 = vpop.f32.mrf.mxu0
      %v908 = vadd.f32 %v861, %v907
      %909 = vmatmul.f32.gmra.mxu0 %v882
      %v910 = vpop.f32.mrf.mxu0
      %v911 = vadd.f32 %v866, %v910
      %912 = vmatmul.f32.gmra.mxu0 %v885
      %v913 = vpop.f32.mrf.mxu0
      %v914 = vadd.f32 %v871, %v913
      %915 = vmatmul.f32.gmra.mxu0 %v888
      %v916 = vpop.f32.mrf.mxu0
      %v917 = vadd.f32 %v876, %v916
      %918 = vdwg.mxu0
      %919 = vmatpush.msra.mxu0 0.0
      %920 = vmatpush.msra.mxu0 0.0
      %921 = vmatpush.msra.mxu0 0.0
      %922 = vmatpush.msra.mxu0 0.0
      %923 = vmatpush.msra.mxu0 0.0
      %924 = vmatpush.msra.mxu0 0.0
      %925 = vmatpush.msra.mxu0 0.0
      %926 = vmatpush.msra.mxu0 0.0
      %927 = vmatpush.msra.mxu0 0.0
      %928 = vmatpush.msra.mxu0 0.0
      %929 = vmatpush.msra.mxu0 0.0
      %930 = vmatpush.msra.mxu0 0.0
      %931 = vmatpush.msra.mxu0 %v847
      %932 = vmatpush.msra.mxu0 %v845
      %933 = vmatpush.msra.mxu0 %v843
      %934 = vmatpush.msra.mxu0 %v841
      %935 = vmatmul.f32.gmra.mxu0 %v879
      %v936 = vpop.f32.mrf.mxu0
      %v937 = vadd.f32 %v861, %v936
      %938 = vmatmul.f32.gmra.mxu0 %v882
      %v939 = vpop.f32.mrf.mxu0
      %v940 = vadd.f32 %v866, %v939
      %941 = vmatmul.f32.gmra.mxu0 %v885
      %v942 = vpop.f32.mrf.mxu0
      %v943 = vadd.f32 %v871, %v942
      %944 = vmatmul.f32.gmra.mxu0 %v888
      %v945 = vpop.f32.mrf.mxu0
      %v946 = vadd.f32 %v876, %v945
      %947 = vdwg.mxu0
      %v948 = vmax.f32 %v908, 0.0
      %v949 = vmax.f32 %v937, 0.0
      %v950 = vmax.f32 %v911, 0.0
      %v951 = vmax.f32 %v940, 0.0
      %v952 = vmax.f32 %v914, 0.0
      %v953 = vmax.f32 %v943, 0.0
      %v954 = vmax.f32 %v917, 0.0
      %v955 = vmax.f32 %v946, 0.0
      %s956 = scalar_lea.vmem %s2, 192
      %v957 = vld [vmem:[%s956] sm:$0xff]
      %v958 = vld [vmem:[%s956 + $0x8] sm:$0xff]
      %v959 = vld [vmem:[%s956 + $0x10] sm:$0xff]
      %v960 = vld [vmem:[%s956 + $0x18] sm:$0xff]
      %s961 = scalar_lea.vmem %s3, 224
      %v962 = vld [vmem:[%s961] sm:$0xff]
      %v963 = vld [vmem:[%s961 + $0x8] sm:$0xff]
      %v964 = vld [vmem:[%s961 + $0x10] sm:$0xff]
      %v965 = vld [vmem:[%s961 + $0x18] sm:$0xff]
      %967 = vset.pattern.permute.xlu0 0
      %968 = vperm.xlu0 %967, %v962
      %v969 = vpop.permute.xlu0 %968
      %972 = vset.pattern.permute.xlu0 0
      %973 = vperm.xlu0 %972, %v963
      %v974 = vpop.permute.xlu0 %973
      %977 = vset.pattern.permute.xlu0 0
      %978 = vperm.xlu0 %977, %v964
      %v979 = vpop.permute.xlu0 %978
      %982 = vset.pattern.permute.xlu0 0
      %983 = vperm.xlu0 %982, %v965
      %v984 = vpop.permute.xlu0 %983
      %v987 = vsel %vm337, %v957, 0
      %v990 = vsel %vm337, %v958, 0
      %v993 = vsel %vm337, %v959, 0
      %v996 = vsel %vm337, %v960, 0
      %998 = vmatpush.msra.mxu0 0.0
      %999 = vmatpush.msra.mxu0 0.0
      %1000 = vmatpush.msra.mxu0 0.0
      %1001 = vmatpush.msra.mxu0 0.0
      %1002 = vmatpush.msra.mxu0 0.0
      %1003 = vmatpush.msra.mxu0 0.0
      %1004 = vmatpush.msra.mxu0 0.0
      %1005 = vmatpush.msra.mxu0 0.0
      %1006 = vmatpush.msra.mxu0 0.0
      %1007 = vmatpush.msra.mxu0 0.0
      %1008 = vmatpush.msra.mxu0 0.0
      %1009 = vmatpush.msra.mxu0 0.0
      %1010 = vmatpush.msra.mxu0 %v954
      %1011 = vmatpush.msra.mxu0 %v952
      %1012 = vmatpush.msra.mxu0 %v950
      %1013 = vmatpush.msra.mxu0 %v948
      %1014 = vmatmul.f32.gmra.mxu0 %v987
      %v1015 = vpop.f32.mrf.mxu0
      %v1016 = vadd.f32 %v969, %v1015
      %1017 = vmatmul.f32.gmra.mxu0 %v990
      %v1018 = vpop.f32.mrf.mxu0
      %v1019 = vadd.f32 %v974, %v1018
      %1020 = vmatmul.f32.gmra.mxu0 %v993
      %v1021 = vpop.f32.mrf.mxu0
      %v1022 = vadd.f32 %v979, %v1021
      %1023 = vmatmul.f32.gmra.mxu0 %v996
      %v1024 = vpop.f32.mrf.mxu0
      %v1025 = vadd.f32 %v984, %v1024
      %1026 = vdwg.mxu0
      %1027 = vmatpush.msra.mxu0 0.0
      %1028 = vmatpush.msra.mxu0 0.0
      %1029 = vmatpush.msra.mxu0 0.0
      %1030 = vmatpush.msra.mxu0 0.0
      %1031 = vmatpush.msra.mxu0 0.0
      %1032 = vmatpush.msra.mxu0 0.0
      %1033 = vmatpush.msra.mxu0 0.0
      %1034 = vmatpush.msra.mxu0 0.0
      %1035 = vmatpush.msra.mxu0 0.0
      %1036 = vmatpush.msra.mxu0 0.0
      %1037 = vmatpush.msra.mxu0 0.0
      %1038 = vmatpush.msra.mxu0 0.0
      %1039 = vmatpush.msra.mxu0 %v955
      %1040 = vmatpush.msra.mxu0 %v953
      %1041 = vmatpush.msra.mxu0 %v951
      %1042 = vmatpush.msra.mxu0 %v949
      %1043 = vmatmul.f32.gmra.mxu0 %v987
      %v1044 = vpop.f32.mrf.mxu0
      %v1045 = vadd.f32 %v969, %v1044
      %1046 = vmatmul.f32.gmra.mxu0 %v990
      %v1047 = vpop.f32.mrf.mxu0
      %v1048 = vadd.f32 %v974, %v1047
      %1049 = vmatmul.f32.gmra.mxu0 %v993
      %v1050 = vpop.f32.mrf.mxu0
      %v1051 = vadd.f32 %v979, %v1050
      %1052 = vmatmul.f32.gmra.mxu0 %v996
      %v1053 = vpop.f32.mrf.mxu0
      %v1054 = vadd.f32 %v984, %v1053
      %1055 = vdwg.mxu0
      %v1056 = vmax.f32 %v1016, 0.0
      %v1057 = vmax.f32 %v1045, 0.0
      %v1058 = vmax.f32 %v1019, 0.0
      %v1059 = vmax.f32 %v1048, 0.0
      %v1060 = vmax.f32 %v1022, 0.0
      %v1061 = vmax.f32 %v1051, 0.0
      %v1062 = vmax.f32 %v1025, 0.0
      %v1063 = vmax.f32 %v1054, 0.0
      %s1064 = scalar_lea.vmem %s2, 224
      %v1065 = vld [vmem:[%s1064] sm:$0xff]
      %v1066 = vld [vmem:[%s1064 + $0x8] sm:$0xff]
      %v1067 = vld [vmem:[%s1064 + $0x10] sm:$0xff]
      %v1068 = vld [vmem:[%s1064 + $0x18] sm:$0xff]
      %s1069 = scalar_lea.vmem %s3, 256
      %v1070 = vld [vmem:[%s1069] sm:$0xff]
      %v1071 = vld [vmem:[%s1069 + $0x8] sm:$0xff]
      %v1072 = vld [vmem:[%s1069 + $0x10] sm:$0xff]
      %v1073 = vld [vmem:[%s1069 + $0x18] sm:$0xff]
      %1075 = vset.pattern.permute.xlu0 0
      %1076 = vperm.xlu0 %1075, %v1070
      %v1077 = vpop.permute.xlu0 %1076
      %1080 = vset.pattern.permute.xlu0 0
      %1081 = vperm.xlu0 %1080, %v1071
      %v1082 = vpop.permute.xlu0 %1081
      %1085 = vset.pattern.permute.xlu0 0
      %1086 = vperm.xlu0 %1085, %v1072
      %v1087 = vpop.permute.xlu0 %1086
      %1090 = vset.pattern.permute.xlu0 0
      %1091 = vperm.xlu0 %1090, %v1073
      %v1092 = vpop.permute.xlu0 %1091
      %v1095 = vsel %vm337, %v1065, 0
      %v1098 = vsel %vm337, %v1066, 0
      %v1101 = vsel %vm337, %v1067, 0
      %v1104 = vsel %vm337, %v1068, 0
      %1106 = vmatpush.msra.mxu0 0.0
      %1107 = vmatpush.msra.mxu0 0.0
      %1108 = vmatpush.msra.mxu0 0.0
      %1109 = vmatpush.msra.mxu0 0.0
      %1110 = vmatpush.msra.mxu0 0.0
      %1111 = vmatpush.msra.mxu0 0.0
      %1112 = vmatpush.msra.mxu0 0.0
      %1113 = vmatpush.msra.mxu0 0.0
      %1114 = vmatpush.msra.mxu0 0.0
      %1115 = vmatpush.msra.mxu0 0.0
      %1116 = vmatpush.msra.mxu0 0.0
      %1117 = vmatpush.msra.mxu0 0.0
      %1118 = vmatpush.msra.mxu0 %v1062
      %1119 = vmatpush.msra.mxu0 %v1060
      %1120 = vmatpush.msra.mxu0 %v1058
      %1121 = vmatpush.msra.mxu0 %v1056
      %1122 = vmatmul.f32.gmra.mxu0 %v1095
      %v1123 = vpop.f32.mrf.mxu0
      %v1124 = vadd.f32 %v1077, %v1123
      %1125 = vmatmul.f32.gmra.mxu0 %v1098
      %v1126 = vpop.f32.mrf.mxu0
      %v1127 = vadd.f32 %v1082, %v1126
      %1128 = vmatmul.f32.gmra.mxu0 %v1101
      %v1129 = vpop.f32.mrf.mxu0
      %v1130 = vadd.f32 %v1087, %v1129
      %1131 = vmatmul.f32.gmra.mxu0 %v1104
      %v1132 = vpop.f32.mrf.mxu0
      %v1133 = vadd.f32 %v1092, %v1132
      %1134 = vdwg.mxu0
      %1135 = vmatpush.msra.mxu0 0.0
      %1136 = vmatpush.msra.mxu0 0.0
      %1137 = vmatpush.msra.mxu0 0.0
      %1138 = vmatpush.msra.mxu0 0.0
      %1139 = vmatpush.msra.mxu0 0.0
      %1140 = vmatpush.msra.mxu0 0.0
      %1141 = vmatpush.msra.mxu0 0.0
      %1142 = vmatpush.msra.mxu0 0.0
      %1143 = vmatpush.msra.mxu0 0.0
      %1144 = vmatpush.msra.mxu0 0.0
      %1145 = vmatpush.msra.mxu0 0.0
      %1146 = vmatpush.msra.mxu0 0.0
      %1147 = vmatpush.msra.mxu0 %v1063
      %1148 = vmatpush.msra.mxu0 %v1061
      %1149 = vmatpush.msra.mxu0 %v1059
      %1150 = vmatpush.msra.mxu0 %v1057
      %1151 = vmatmul.f32.gmra.mxu0 %v1095
      %v1152 = vpop.f32.mrf.mxu0
      %v1153 = vadd.f32 %v1077, %v1152
      %1154 = vmatmul.f32.gmra.mxu0 %v1098
      %v1155 = vpop.f32.mrf.mxu0
      %v1156 = vadd.f32 %v1082, %v1155
      %1157 = vmatmul.f32.gmra.mxu0 %v1101
      %v1158 = vpop.f32.mrf.mxu0
      %v1159 = vadd.f32 %v1087, %v1158
      %1160 = vmatmul.f32.gmra.mxu0 %v1104
      %v1161 = vpop.f32.mrf.mxu0
      %v1162 = vadd.f32 %v1092, %v1161
      %1163 = vdwg.mxu0
      %v1164 = vmax.f32 %v1124, 0.0
      %v1165 = vmax.f32 %v1153, 0.0
      %v1166 = vmax.f32 %v1127, 0.0
      %v1167 = vmax.f32 %v1156, 0.0
      %v1168 = vmax.f32 %v1130, 0.0
      %v1169 = vmax.f32 %v1159, 0.0
      %v1170 = vmax.f32 %v1133, 0.0
      %v1171 = vmax.f32 %v1162, 0.0
      %s1172 = scalar_lea.vmem %s2, 256
      %v1173 = vld [vmem:[%s1172] sm:$0xff]
      %v1174 = vld [vmem:[%s1172 + $0x8] sm:$0xff]
      %v1175 = vld [vmem:[%s1172 + $0x10] sm:$0xff]
      %v1176 = vld [vmem:[%s1172 + $0x18] sm:$0xff]
      %s1177 = scalar_lea.vmem %s3, 288
      %v1178 = vld [vmem:[%s1177] sm:$0xff]
      %v1179 = vld [vmem:[%s1177 + $0x8] sm:$0xff]
      %v1180 = vld [vmem:[%s1177 + $0x10] sm:$0xff]
      %v1181 = vld [vmem:[%s1177 + $0x18] sm:$0xff]
      %1183 = vset.pattern.permute.xlu0 0
      %1184 = vperm.xlu0 %1183, %v1178
      %v1185 = vpop.permute.xlu0 %1184
      %1188 = vset.pattern.permute.xlu0 0
      %1189 = vperm.xlu0 %1188, %v1179
      %v1190 = vpop.permute.xlu0 %1189
      %1193 = vset.pattern.permute.xlu0 0
      %1194 = vperm.xlu0 %1193, %v1180
      %v1195 = vpop.permute.xlu0 %1194
      %1198 = vset.pattern.permute.xlu0 0
      %1199 = vperm.xlu0 %1198, %v1181
      %v1200 = vpop.permute.xlu0 %1199
      %v1203 = vsel %vm337, %v1173, 0
      %v1206 = vsel %vm337, %v1174, 0
      %v1209 = vsel %vm337, %v1175, 0
      %v1212 = vsel %vm337, %v1176, 0
      %1214 = vmatpush.msra.mxu0 0.0
      %1215 = vmatpush.msra.mxu0 0.0
      %1216 = vmatpush.msra.mxu0 0.0
      %1217 = vmatpush.msra.mxu0 0.0
      %1218 = vmatpush.msra.mxu0 0.0
      %1219 = vmatpush.msra.mxu0 0.0
      %1220 = vmatpush.msra.mxu0 0.0
      %1221 = vmatpush.msra.mxu0 0.0
      %1222 = vmatpush.msra.mxu0 0.0
      %1223 = vmatpush.msra.mxu0 0.0
      %1224 = vmatpush.msra.mxu0 0.0
      %1225 = vmatpush.msra.mxu0 0.0
      %1226 = vmatpush.msra.mxu0 %v1170
      %1227 = vmatpush.msra.mxu0 %v1168
      %1228 = vmatpush.msra.mxu0 %v1166
      %1229 = vmatpush.msra.mxu0 %v1164
      %1230 = vmatmul.f32.gmra.mxu0 %v1203
      %v1231 = vpop.f32.mrf.mxu0
      %v1232 = vadd.f32 %v1185, %v1231
      %1233 = vmatmul.f32.gmra.mxu0 %v1206
      %v1234 = vpop.f32.mrf.mxu0
      %v1235 = vadd.f32 %v1190, %v1234
      %1236 = vmatmul.f32.gmra.mxu0 %v1209
      %v1237 = vpop.f32.mrf.mxu0
      %v1238 = vadd.f32 %v1195, %v1237
      %1239 = vmatmul.f32.gmra.mxu0 %v1212
      %v1240 = vpop.f32.mrf.mxu0
      %v1241 = vadd.f32 %v1200, %v1240
      %1242 = vdwg.mxu0
      %1243 = vmatpush.msra.mxu0 0.0
      %1244 = vmatpush.msra.mxu0 0.0
      %1245 = vmatpush.msra.mxu0 0.0
      %1246 = vmatpush.msra.mxu0 0.0
      %1247 = vmatpush.msra.mxu0 0.0
      %1248 = vmatpush.msra.mxu0 0.0
      %1249 = vmatpush.msra.mxu0 0.0
      %1250 = vmatpush.msra.mxu0 0.0
      %1251 = vmatpush.msra.mxu0 0.0
      %1252 = vmatpush.msra.mxu0 0.0
      %1253 = vmatpush.msra.mxu0 0.0
      %1254 = vmatpush.msra.mxu0 0.0
      %1255 = vmatpush.msra.mxu0 %v1171
      %1256 = vmatpush.msra.mxu0 %v1169
      %1257 = vmatpush.msra.mxu0 %v1167
      %1258 = vmatpush.msra.mxu0 %v1165
      %1259 = vmatmul.f32.gmra.mxu0 %v1203
      %v1260 = vpop.f32.mrf.mxu0
      %v1261 = vadd.f32 %v1185, %v1260
      %1262 = vmatmul.f32.gmra.mxu0 %v1206
      %v1263 = vpop.f32.mrf.mxu0
      %v1264 = vadd.f32 %v1190, %v1263
      %1265 = vmatmul.f32.gmra.mxu0 %v1209
      %v1266 = vpop.f32.mrf.mxu0
      %v1267 = vadd.f32 %v1195, %v1266
      %1268 = vmatmul.f32.gmra.mxu0 %v1212
      %v1269 = vpop.f32.mrf.mxu0
      %v1270 = vadd.f32 %v1200, %v1269
      %1271 = vdwg.mxu0
      %v1272 = vmax.f32 %v1232, 0.0
      %v1273 = vmax.f32 %v1261, 0.0
      %v1274 = vmax.f32 %v1235, 0.0
      %v1275 = vmax.f32 %v1264, 0.0
      %v1276 = vmax.f32 %v1238, 0.0
      %v1277 = vmax.f32 %v1267, 0.0
      %v1278 = vmax.f32 %v1241, 0.0
      %v1279 = vmax.f32 %v1270, 0.0
      %s1280 = scalar_lea.vmem %s2, 288
      %v1281 = vld [vmem:[%s1280] sm:$0xff]
      %v1282 = vld [vmem:[%s1280 + $0x8] sm:$0xff]
      %v1283 = vld [vmem:[%s1280 + $0x10] sm:$0xff]
      %v1284 = vld [vmem:[%s1280 + $0x18] sm:$0xff]
      %s1285 = scalar_lea.vmem %s3, 320
      %v1286 = vld [vmem:[%s1285] sm:$0xff]
      %v1287 = vld [vmem:[%s1285 + $0x8] sm:$0xff]
      %v1288 = vld [vmem:[%s1285 + $0x10] sm:$0xff]
      %v1289 = vld [vmem:[%s1285 + $0x18] sm:$0xff]
      %1291 = vset.pattern.permute.xlu0 0
      %1292 = vperm.xlu0 %1291, %v1286
      %v1293 = vpop.permute.xlu0 %1292
      %1296 = vset.pattern.permute.xlu0 0
      %1297 = vperm.xlu0 %1296, %v1287
      %v1298 = vpop.permute.xlu0 %1297
      %1300 = vset.pattern.permute.xlu0 0
      %1301 = vperm.xlu0 %1300, %v1288
      %v1302 = vpop.permute.xlu0 %1301
      %1304 = vset.pattern.permute.xlu0 0
      %1305 = vperm.xlu0 %1304, %v1289
      %v1306 = vpop.permute.xlu0 %1305
      %v1308 = vsel %vm337, %v1281, 0
      %v1311 = vsel %vm337, %v1282, 0
      %v1314 = vsel %vm337, %v1283, 0
      %v1317 = vsel %vm337, %v1284, 0
      %1319 = vmatpush.msra.mxu0 0.0
      %1320 = vmatpush.msra.mxu0 0.0
      %1321 = vmatpush.msra.mxu0 0.0
      %1322 = vmatpush.msra.mxu0 0.0
      %1323 = vmatpush.msra.mxu0 0.0
      %1324 = vmatpush.msra.mxu0 0.0
      %1325 = vmatpush.msra.mxu0 0.0
      %1326 = vmatpush.msra.mxu0 0.0
      %1327 = vmatpush.msra.mxu0 0.0
      %1328 = vmatpush.msra.mxu0 0.0
      %1329 = vmatpush.msra.mxu0 0.0
      %1330 = vmatpush.msra.mxu0 0.0
      %1331 = vmatpush.msra.mxu0 %v1278
      %1332 = vmatpush.msra.mxu0 %v1276
      %1333 = vmatpush.msra.mxu0 %v1274
      %1334 = vmatpush.msra.mxu0 %v1272
      %1335 = vmatmul.f32.gmra.mxu0 %v1308
      %v1336 = vpop.f32.mrf.mxu0
      %v1337 = vadd.f32 %v1293, %v1336
      %1338 = vmatmul.f32.gmra.mxu0 %v1311
      %v1339 = vpop.f32.mrf.mxu0
      %1340 = vmatmul.f32.gmra.mxu0 %v1314
      %v1341 = vpop.f32.mrf.mxu0
      %1342 = vmatmul.f32.gmra.mxu0 %v1317
      %v1343 = vpop.f32.mrf.mxu0
      %1344 = vdwg.mxu0
      %1345 = vmatpush.msra.mxu0 0.0
      %1346 = vmatpush.msra.mxu0 0.0
      %1347 = vmatpush.msra.mxu0 0.0
      %1348 = vmatpush.msra.mxu0 0.0
      %1349 = vmatpush.msra.mxu0 0.0
      %1350 = vmatpush.msra.mxu0 0.0
      %1351 = vmatpush.msra.mxu0 0.0
      %1352 = vmatpush.msra.mxu0 0.0
      %1353 = vmatpush.msra.mxu0 0.0
      %1354 = vmatpush.msra.mxu0 0.0
      %1355 = vmatpush.msra.mxu0 0.0
      %1356 = vmatpush.msra.mxu0 0.0
      %1357 = vmatpush.msra.mxu0 %v1279
      %1358 = vmatpush.msra.mxu0 %v1277
      %1359 = vmatpush.msra.mxu0 %v1275
      %1360 = vmatpush.msra.mxu0 %v1273
      %1361 = vmatmul.f32.gmra.mxu0 %v1308
      %v1362 = vpop.f32.mrf.mxu0
      %v1363 = vadd.f32 %v1293, %v1362
      %1364 = vmatmul.f32.gmra.mxu0 %v1311
      %v1365 = vpop.f32.mrf.mxu0
      %1366 = vmatmul.f32.gmra.mxu0 %v1314
      %v1367 = vpop.f32.mrf.mxu0
      %1368 = vmatmul.f32.gmra.mxu0 %v1317
      %v1369 = vpop.f32.mrf.mxu0
      %1370 = vdwg.mxu0
      %v1373 = vrot.slane %v1363, 7
      %vm1374 = vcmask 1040384
      %v1375 = vsel %vm1374, %v1337, %v1373
      %v1377 = vlaneseq
      %vm1378 = vcmp.ge.s32.totalorder %v1377, 0
      %vm1379 = vcmp.lt.s32.totalorder %v1377, 256
      %vm1380 = vmand %vm1378, %vm1379
      %1381 = vst.msk [vmem:[%s197] sm:$0x3] %vm1380, %v1375
      %s1382 = smul.u32 2, %s15
      %p1383 = scmp.lt.s32.totalorder %s1382, 3
      %s1384 = scalar_select %p1383, %s1382, 3
      %s1385 = scalar_lea.vmem %s4, %s1384
      // Predicated region
      $region37: #{big_model_forward_fm.1} parent=35 // pred_check
        %p1386 = pneg %p122
      $region38: #{big_model_forward_fm.1} parent=35 // pred_check_branch
        %1388 = sbr.rel (%p1386) target = $region40
      $region39: #{big_model_forward_fm.1} parent=35 // pred_region
        %s1389 = smul.u32 2, %s15
      $region40: #{big_model_forward_fm.1} parent=35 // pred_fallthru
        _
    $region36: #{big_model_forward_fm.1} parent=5 // pred_fallthru
      _
    %p1390 = scmp.le.s32.totalorder 2, %s10
    // Predicated region
    $region41: #{big_model_forward_fm.1} parent=5 // pred_check
      %p1391 = pneg %p1390
    $region42: #{big_model_forward_fm.1} parent=5 // pred_check_branch
      %1393 = sbr.rel (%p1391) target = $region44
    $region43: #{big_model_forward_fm.1} parent=5 // pred_region
      %s1394 = ssub.s32 %s10, 2
      // Predicated region
      $region45: #{big_model_forward_fm.1} parent=43 // pred_check
        %p1395 = pneg %p128
      $region46: #{big_model_forward_fm.1} parent=43 // pred_check_branch
        %1397 = sbr.rel (%p1395) target = $region48
      $region47: #{big_model_forward_fm.1} parent=43 // pred_region
        %s1398 = smul.u32 2, %s16
        %p1399 = scmp.lt.s32.totalorder %s1398, 3
        %s1400 = scalar_select %p1399, %s1398, 3
        %s1401 = scalar_lea.vmem %s4, %s1400
      $region48: #{big_model_forward_fm.1} parent=43 // pred_fallthru
        _
    $region44: #{big_model_forward_fm.1} parent=5 // pred_fallthru
      _
  $region6: #{big_model_forward_fm.1} parent=0 // loop_footer
    %s14 = sadd.s32 1, %s10
  $region7: #{big_model_forward_fm.1} parent=0 // loop_footer_branch
    %9 = sbr.rel target = $region3
  $region8: #{big_model_forward_fm.1} parent=0 // loop_exit
    _

</llo_original>
